<compile_context>
chip_gen: v7x
topology: tpu7x:2x2x1
jax: 0.10.0
libtpu: 0.0.40
codegen_flags: <defaults>
</compile_context>

<pallas_src>
import functools

import jax
import jax.numpy as jnp
from jax.experimental import pallas as pl
from jax.experimental.pallas import tpu as pltpu


# ------------------------------- utilities --------------------------------- #
def _round_up(x, m):
    return ((x + m - 1) // m) * m


def _vmem_limit_bytes():
    """Generation-aware VMEM limit with headroom for compiler scratch."""
    cap = 64 * 1024 * 1024
    try:
        info = pltpu.get_tpu_info()
        cap = int(getattr(info, "vmem_capacity_bytes", cap))
    except Exception:
        pass
    # v5e/v6e (128 MiB) -> 96-100 MiB; v7x (64 MiB) -> 48 MiB.
    return min(int(cap * 0.75), 100 * 1024 * 1024)


def _pick_block(total, target, quantum=256):
    """Largest multiple of `quantum` that divides `total` and is <= target."""
    best = quantum
    t = quantum
    while t <= total:
        if total % t == 0 and t <= target:
            best = t
        t += quantum
    return best


def _choose_tiles(n_pad, fin_pad_max, fout_pad_max, vmem_limit):
    # >= 2 row tiles so both v7x TensorCores get work on the "parallel" axis.
    tm = _pick_block(n_pad, max(256, min(512, n_pad // 2)))
    budget = int(vmem_limit * 0.6)
    tk = 256
    cand = 256
    while cand <= min(n_pad, 4096):
        if n_pad % cand == 0:
            ws = (2 * tm * cand * 2                    # Â blocks (2 bufs, bf16)
                  + 2 * cand * fin_pad_max * 2         # H blocks
                  + 2 * fin_pad_max * fout_pad_max * 2  # W (resident)
                  + 2 * tm * fout_pad_max * 4          # out blocks (worst f32)
                  + tm * fout_pad_max * 4)             # acc scratch
            if ws <= budget:
                tk = cand
        cand += 256
    return tm, tk


# --------------------- fused whole-stack kernel (small N) ------------------- #
def _fused_stack_kernel(*refs, num_layers):
    """relu(Â @ (H @ W_l) + b_l) for all layers, with Â resident in VMEM."""
    a_ref, h_ref = refs[0], refs[1]
    o_ref = refs[-1]
    a = a_ref[...]                      # bf16, padded, VMEM-resident all layers
    h = h_ref[...]                      # bf16, padded
    out = None
    for li in range(num_layers):
        w = refs[2 + 2 * li][...]       # bf16 (Fin_pad, Fout_pad)
        b = refs[3 + 2 * li][...]       # f32  (1, Fout_pad)
        t = jnp.dot(h, w, preferred_element_type=jnp.float32)
        out = jnp.dot(a, t.astype(jnp.bfloat16),
                      preferred_element_type=jnp.float32)
        out = jnp.maximum(out + b, 0.0)
        h = out.astype(jnp.bfloat16)
    o_ref[...] = out                    # f32 output


# ----------------- tiled per-layer kernel (large N, streamed Â) ------------- #
def _layer_tile_body(a_ref, h_ref, w_ref, b_ref, o_ref, acc_ref, apply_act):
    k = pl.program_id(1)

    @pl.when(k == 0)
    def _init():
        acc_ref[...] = jnp.zeros_like(acc_ref)

    # Feature transform for this node tile (W is VMEM-resident), then aggregate.
    t = jnp.dot(h_ref[...], w_ref[...], preferred_element_type=jnp.float32)
    acc_ref[...] += jnp.dot(a_ref[...], t.astype(jnp.bfloat16),
                            preferred_element_type=jnp.float32)

    @pl.when(k == pl.num_programs(1) - 1)
    def _finalize():
        out = acc_ref[...] + b_ref[...]
        if apply_act:
            out = jnp.maximum(out, 0.0)
        o_ref[...] = out.astype(o_ref.dtype)


def _layer_kernel_acc(a_ref, h_ref, w_ref, b_ref, o_ref, acc_ref, *, apply_act):
    # bf16 output: accumulate in an f32 VMEM scratch.
    _layer_tile_body(a_ref, h_ref, w_ref, b_ref, o_ref, acc_ref, apply_act)


def _layer_kernel_noacc(a_ref, h_ref, w_ref, b_ref, o_ref, *, apply_act):
    # f32 output: accumulate directly into the VMEM-resident output block.
    _layer_tile_body(a_ref, h_ref, w_ref, b_ref, o_ref, o_ref, apply_act)


def _gcn_layer_tiled(a_pad, h_pad, w, b, *, out_dtype, tm, tk, vmem_limit):
    n_pad = a_pad.shape[0]
    fin_pad = h_pad.shape[1]
    f_in, f_out = w.shape
    fout_pad = _round_up(f_out, 128)

    # Weights / bias are tiny; pad + cast inline (single cheap XLA ops).
    w_pad = jnp.pad(w.astype(jnp.bfloat16),
                    ((0, fin_pad - f_in), (0, fout_pad - f_out)))
    b_pad = jnp.pad(b.astype(jnp.float32).reshape(1, f_out),
                    ((0, 0), (0, fout_pad - f_out)))

    if out_dtype == jnp.float32:
        kernel = functools.partial(_layer_kernel_noacc, apply_act=True)
        scratch = []
    else:
        kernel = functools.partial(_layer_kernel_acc, apply_act=True)
        scratch = [pltpu.VMEM((tm, fout_pad), jnp.float32)]

    out_bytes = jnp.dtype(out_dtype).itemsize
    return pl.pallas_call(
        kernel,
        out_shape=jax.ShapeDtypeStruct((n_pad, fout_pad), out_dtype),
        grid_spec=pltpu.PrefetchScalarGridSpec(
            num_scalar_prefetch=0,
            grid=(n_pad // tm, n_pad // tk),
            in_specs=[
                pl.BlockSpec((tm, tk), lambda i, k: (i, k)),             # Â
                pl.BlockSpec((tk, fin_pad), lambda i, k: (k, 0)),        # H
                pl.BlockSpec((fin_pad, fout_pad), lambda i, k: (0, 0)),  # W
                pl.BlockSpec((1, fout_pad), lambda i, k: (0, 0)),        # bias
            ],
            out_specs=pl.BlockSpec((tm, fout_pad), lambda i, k: (i, 0)),
            scratch_shapes=scratch,
        ),
        compiler_params=pltpu.CompilerParams(
            dimension_semantics=("parallel", "arbitrary"),
            vmem_limit_bytes=vmem_limit,
        ),
        cost_estimate=pl.CostEstimate(
            flops=2 * n_pad * n_pad * fout_pad
            + 2 * (n_pad // tm) * n_pad * fin_pad * fout_pad,
            transcendentals=0,
            bytes_accessed=2 * n_pad * n_pad + 2 * n_pad * fin_pad
            + n_pad * fout_pad * out_bytes,
        ),
    )(a_pad, h_pad, w_pad, b_pad)


# ------------------------------ forward builder ----------------------------- #
_SMALL_N = 1024      # fused whole-stack (Â VMEM-resident) path threshold
_SMALL_F = 512


def _make_forward(n, in_feats, hidden_dims):
    """Builds a jitted forward specialized to the static graph/layer sizes."""
    num_layers = len(hidden_dims)
    vmem_limit = _vmem_limit_bytes()
    max_feat = max([in_feats] + list(hidden_dims))
    use_fused = (n <= _SMALL_N) and (max_feat <= _SMALL_F)

    if use_fused:
        # Everything lane-aligned and fully VMEM-resident; one pallas_call.
        n_pad = _round_up(n, 128)
        dims_pad = [_round_up(d, 128) for d in [in_feats] + list(hidden_dims)]

        def forward(a_prep, features, params):
            h = jnp.pad(features.astype(jnp.bfloat16),
                        ((0, n_pad - n), (0, dims_pad[0] - in_feats)))
            args = [a_prep, h]
            for li, (w, b) in enumerate(params):
                f_i, f_o = w.shape
                args.append(jnp.pad(w.astype(jnp.bfloat16),
                                    ((0, dims_pad[li] - f_i),
                                     (0, dims_pad[li + 1] - f_o))))
                args.append(jnp.pad(b.astype(jnp.float32).reshape(1, f_o),
                                    ((0, 0), (0, dims_pad[li + 1] - f_o))))
            out = pl.pallas_call(
                functools.partial(_fused_stack_kernel, num_layers=num_layers),
                out_shape=jax.ShapeDtypeStruct((n_pad, dims_pad[-1]),
                                               jnp.float32),
            )(*args)
            return out[:n, :hidden_dims[-1]]

    else:
        n_pad = _round_up(n, 256)
        fin_pad0 = _round_up(in_feats, 128)
        pads_hidden = [_round_up(d, 128) for d in hidden_dims]
        fin_pad_max = max([fin_pad0] + pads_hidden)
        fout_pad_max = max(pads_hidden)
        tm, tk = _choose_tiles(n_pad, fin_pad_max, fout_pad_max, vmem_limit)

        def forward(a_prep, features, params):
            # Pad features once; keep activations padded bf16 between layers.
            h = jnp.pad(features.astype(jnp.bfloat16),
                        ((0, n_pad - n), (0, fin_pad0 - in_feats)))
            for li, (w, b) in enumerate(params):
                last = li == num_layers - 1
                h = _gcn_layer_tiled(
                    a_prep, h, w, b,
                    out_dtype=jnp.float32 if last else jnp.bfloat16,
                    tm=tm, tk=tk, vmem_limit=vmem_limit)
            # Single logical slice at the end of the stack.
            return h[:n, :hidden_dims[-1]]

    return jax.jit(forward), n_pad


# --------------------------------- Encoder ---------------------------------- #
class Encoder:
    """JAX/Pallas port of dgi.Encoder (GCN stack over a fixed graph)."""

    def __init__(self, a_norm, in_feats, hidden_dims, key):
        n = a_norm.shape[0]
        self.n = n
        self.hidden_dims = list(hidden_dims)
        self.params = []
        dims = [in_feats] + list(hidden_dims)
        for i in range(len(hidden_dims)):
            key, wk = jax.random.split(key)
            fan_in, fan_out = dims[i], dims[i + 1]
            bound = (6.0 / (fan_in + fan_out)) ** 0.5          # Xavier-uniform
            w = jax.random.uniform(wk, (fan_in, fan_out), jnp.float32,
                                   -bound, bound)
            b = jnp.zeros((fan_out,), jnp.float32)
            self.params.append((w, b))

        self._forward, n_pad = _make_forward(n, in_feats, list(hidden_dims))
        # Pre-materialize Â ONCE: bf16, padded to the kernel's node grid.
        self.a_prep = jnp.pad(a_norm.astype(jnp.bfloat16),
                              ((0, n_pad - n), (0, n_pad - n)))

    def __call__(self, features, corrupt=False, key=None):
        if corrupt:
            # torch.randperm(num_nodes) equivalent (needs an explicit key).
            perm = jax.random.permutation(key, features.shape[0])
            features = features[perm]
        return self._forward(self.a_prep, features, tuple(self.params))


# ------------------------------- demo / check ------------------------------- #
def build_normalized_adjacency(n):
    """Deterministic small graph: ring edges + self loops, sym-normalized."""
    idx = jnp.arange(n)
    adj = jnp.zeros((n, n), jnp.float32)
    adj = adj.at[idx, (idx + 1) % n].set(1.0)
    adj = adj.at[(idx + 1) % n, idx].set(1.0)
    adj = adj + jnp.eye(n, dtype=jnp.float32)
    deg = adj.sum(axis=1)
    d = 1.0 / jnp.sqrt(deg)
    return adj * d[:, None] * d[None, :]


def _reference(a_norm, features, params):
    h = features
    for (w, b) in params:
        h = jnp.maximum(a_norm @ (h @ w) + b[None, :], 0.0)
    return h


if __name__ == "__main__":
    key = jax.random.PRNGKey(0)

    # ---- small demo (DGI-style shapes): single fused VMEM-resident call ----
    n_nodes, in_feats, hidden_dims = 8, 16, [32, 32]
    key, fk, pk, ck = jax.random.split(key, 4)
    feats = jax.random.normal(fk, (n_nodes, in_feats), jnp.float32)
    a_norm = build_normalized_adjacency(n_nodes)
    enc = Encoder(a_norm, in_feats, hidden_dims, pk)

    out = enc(feats, corrupt=False)
    jax.block_until_ready(out)
    out_c = enc(feats, corrupt=True, key=ck)
    jax.block_until_ready(out_c)

    ref = _reference(a_norm, feats, enc.params)
    assert out.shape == (n_nodes, hidden_dims[-1])
    assert out_c.shape == (n_nodes, hidden_dims[-1])
    err = float(jnp.max(jnp.abs(out - ref)))
    assert jnp.allclose(out, ref, atol=1e-1, rtol=1e-1), (
        "fused path max abs err %f" % err)

    # ---- larger graph: exercises the tiled streaming-Â path ----------------
    n_big, in_big, hid_big = 5000, 96, [64, 32]
    key, fk2, pk2 = jax.random.split(key, 3)
    feats_big = jax.random.normal(fk2, (n_big, in_big), jnp.float32)
    a_big = build_normalized_adjacency(n_big)
    enc_big = Encoder(a_big, in_big, hid_big, pk2)

    out_big = enc_big(feats_big, corrupt=False)
    jax.block_until_ready(out_big)
    ref_big = _reference(a_big, feats_big, enc_big.params)
    assert out_big.shape == (n_big, hid_big[-1])
    err_big = float(jnp.max(jnp.abs(out_big - ref_big)))
    assert jnp.allclose(out_big, ref_big, atol=2e-1, rtol=2e-1), (
        "tiled path max abs err %f" % err_big)

    print("KERNEL_OK")
</pallas_src>

<mosaic_0001>
module attributes {stable_mosaic.version = 11 : i64} {
  func.func @_fused_stack_kernel(%arg0: memref<128x128xbf16, #tpu.memory_space<vmem>>, %arg1: memref<128x128xbf16, #tpu.memory_space<vmem>>, %arg2: memref<128x128xbf16, #tpu.memory_space<vmem>>, %arg3: memref<1x128xf32, #tpu.memory_space<vmem>>, %arg4: memref<128x128xbf16, #tpu.memory_space<vmem>>, %arg5: memref<1x128xf32, #tpu.memory_space<vmem>>, %arg6: memref<128x128xf32, #tpu.memory_space<vmem>>) attributes {dimension_semantics = [], scalar_prefetch = 0 : i64, scratch_operands = 0 : i64, tpu.core_type = #tpu.core_type<tc>} {
    %c0 = arith.constant 0 : index
    %c0_0 = arith.constant 0 : index
    %0 = vector.load %arg0[%c0, %c0_0] : memref<128x128xbf16, #tpu.memory_space<vmem>>, vector<128x128xbf16>
    %c0_1 = arith.constant 0 : index
    %c0_2 = arith.constant 0 : index
    %1 = vector.load %arg1[%c0_1, %c0_2] : memref<128x128xbf16, #tpu.memory_space<vmem>>, vector<128x128xbf16>
    %c0_3 = arith.constant 0 : index
    %c0_4 = arith.constant 0 : index
    %2 = vector.load %arg2[%c0_3, %c0_4] : memref<128x128xbf16, #tpu.memory_space<vmem>>, vector<128x128xbf16>
    %c0_5 = arith.constant 0 : index
    %c0_6 = arith.constant 0 : index
    %3 = vector.load %arg3[%c0_5, %c0_6] : memref<1x128xf32, #tpu.memory_space<vmem>>, vector<1x128xf32>
    %cst = arith.constant dense<0.000000e+00> : vector<128x128xf32>
    %4 = tpu.matmul %1, %2, %cst {dimension_numbers = #tpu.dot_dimension_numbers<[1], [0], [0], [1], [0, 0, 1, 1], [], []>} : vector<128x128xbf16>, vector<128x128xbf16>, vector<128x128xf32> -> vector<128x128xf32>
    %5 = arith.truncf %4 : vector<128x128xf32> to vector<128x128xbf16>
    %cst_7 = arith.constant dense<0.000000e+00> : vector<128x128xf32>
    %6 = tpu.matmul %0, %5, %cst_7 {dimension_numbers = #tpu.dot_dimension_numbers<[1], [0], [0], [1], [0, 0, 1, 1], [], []>} : vector<128x128xbf16>, vector<128x128xbf16>, vector<128x128xf32> -> vector<128x128xf32>
    %7 = vector.broadcast %3 : vector<1x128xf32> to vector<128x128xf32>
    %8 = arith.addf %6, %7 : vector<128x128xf32>
    %cst_8 = arith.constant 0.000000e+00 : f32
    %9 = vector.broadcast %cst_8 : f32 to vector<128x128xf32>
    %10 = arith.maximumf %8, %9 : vector<128x128xf32>
    %11 = arith.truncf %10 : vector<128x128xf32> to vector<128x128xbf16>
    %c0_9 = arith.constant 0 : index
    %c0_10 = arith.constant 0 : index
    %12 = vector.load %arg4[%c0_9, %c0_10] : memref<128x128xbf16, #tpu.memory_space<vmem>>, vector<128x128xbf16>
    %c0_11 = arith.constant 0 : index
    %c0_12 = arith.constant 0 : index
    %13 = vector.load %arg5[%c0_11, %c0_12] : memref<1x128xf32, #tpu.memory_space<vmem>>, vector<1x128xf32>
    %cst_13 = arith.constant dense<0.000000e+00> : vector<128x128xf32>
    %14 = tpu.matmul %11, %12, %cst_13 {dimension_numbers = #tpu.dot_dimension_numbers<[1], [0], [0], [1], [0, 0, 1, 1], [], []>} : vector<128x128xbf16>, vector<128x128xbf16>, vector<128x128xf32> -> vector<128x128xf32>
    %15 = arith.truncf %14 : vector<128x128xf32> to vector<128x128xbf16>
    %cst_14 = arith.constant dense<0.000000e+00> : vector<128x128xf32>
    %16 = tpu.matmul %0, %15, %cst_14 {dimension_numbers = #tpu.dot_dimension_numbers<[1], [0], [0], [1], [0, 0, 1, 1], [], []>} : vector<128x128xbf16>, vector<128x128xbf16>, vector<128x128xf32> -> vector<128x128xf32>
    %17 = vector.broadcast %13 : vector<1x128xf32> to vector<128x128xf32>
    %18 = arith.addf %16, %17 : vector<128x128xf32>
    %cst_15 = arith.constant 0.000000e+00 : f32
    %19 = vector.broadcast %cst_15 : f32 to vector<128x128xf32>
    %20 = arith.maximumf %18, %19 : vector<128x128xf32>
    %c0_16 = arith.constant 0 : index
    %c0_17 = arith.constant 0 : index
    %21 = vector.load %arg6[%c0_16, %c0_17] : memref<128x128xf32, #tpu.memory_space<vmem>>, vector<128x128xf32>
    tpu.vector_store %arg6[%c0_16, %c0_17], %20 {strides = array<i32>} : memref<128x128xf32, #tpu.memory_space<vmem>>, vector<128x128xf32>,
    return
  }
}

</mosaic_0001>

<llo_original>
// kernel: forward.1
$region0: #{forward.1}
  #allocation0 [shape = 'u32[]', space=smem, size = 0x4, offset = 0x4, fixed_abs, tag = 'smem constant byte address 0x4 - core index']
  #allocation1 [shape = 'u32[144,128]{1,0:T(1,128)}', space=vmem, size = 0x12000, scoped, tag = 'internal scratch']
  %s0 = inlined_call_operand.vmem [shape: bf16[128,128], index: 0, kind: input, shape index: {}]
  %s1 = inlined_call_operand.vmem [shape: bf16[128,128], index: 1, kind: input, shape index: {}]
  %s2 = inlined_call_operand.vmem [shape: bf16[128,128], index: 2, kind: input, shape index: {}]
  %s3 = inlined_call_operand.vmem [shape: f32[1,128], index: 3, kind: input, shape index: {}]
  %s4 = inlined_call_operand.vmem [shape: bf16[128,128], index: 4, kind: input, shape index: {}]
  %s5 = inlined_call_operand.vmem [shape: f32[1,128], index: 5, kind: input, shape index: {}]
  %s6 = inlined_call_operand.vmem [shape: f32[128,128], index: 6, kind: output, shape index: {}]
  %s7 = sld [smem:[#allocation0]]
  $region34: #{forward.1} parent=0
    _
  %s9 = ssub.s32 1, %s7
  %s10 = scalar_select 0, %s9, %s7
  // Predicated region
  $region2: #{forward.1} parent=0 // pred_check
    _
  $region3: #{forward.1} parent=0 // pred_check_branch
    %12 = sbr.rel (0) target = $region5
  $region4: #{forward.1} parent=0 // pred_region
    _
  $region5: #{forward.1} parent=0 // pred_fallthru
    _
  // Predicated region
  $region6: #{forward.1} parent=0 // pred_check
    _
  $region7: #{forward.1} parent=0 // pred_check_branch
    %14 = sbr.rel (0) target = $region9
  $region8: #{forward.1} parent=0 // pred_region
    _
  $region9: #{forward.1} parent=0 // pred_fallthru
    _
  // Predicated region
  $region10: #{forward.1} parent=0 // pred_check
    _
  $region11: #{forward.1} parent=0 // pred_check_branch
    %16 = sbr.rel (0) target = $region13
  $region12: #{forward.1} parent=0 // pred_region
    _
  $region13: #{forward.1} parent=0 // pred_fallthru
    _
  // Predicated region
  $region14: #{forward.1} parent=0 // pred_check
    _
  $region15: #{forward.1} parent=0 // pred_check_branch
    %18 = sbr.rel (0) target = $region17
  $region16: #{forward.1} parent=0 // pred_region
    _
  $region17: #{forward.1} parent=0 // pred_fallthru
    _
  // Predicated region
  $region18: #{forward.1} parent=0 // pred_check
    _
  $region19: #{forward.1} parent=0 // pred_check_branch
    %20 = sbr.rel (0) target = $region21
  $region20: #{forward.1} parent=0 // pred_region
    _
  $region21: #{forward.1} parent=0 // pred_fallthru
    _
  // Predicated region
  $region22: #{forward.1} parent=0 // pred_check
    _
  $region23: #{forward.1} parent=0 // pred_check_branch
    %22 = sbr.rel (0) target = $region25
  $region24: #{forward.1} parent=0 // pred_region
    _
  $region25: #{forward.1} parent=0 // pred_fallthru
    _
  %v24 = vld [vmem:[%s0] sm:$0xf]
  %v25 = vld [vmem:[%s0 + $0x4] sm:$0xf]
  %v26 = vld [vmem:[%s0 + $0x8] sm:$0xf]
  %v27 = vld [vmem:[%s0 + $0xc] sm:$0xf]
  %v28 = vld [vmem:[%s0 + $0x10] sm:$0xf]
  %v29 = vld [vmem:[%s0 + $0x14] sm:$0xf]
  %v30 = vld [vmem:[%s0 + $0x18] sm:$0xf]
  %v31 = vld [vmem:[%s0 + $0x1c] sm:$0xf]
  %v32 = vld [vmem:[%s0 + $0x20] sm:$0xf]
  %v33 = vld [vmem:[%s0 + $0x24] sm:$0xf]
  %v34 = vld [vmem:[%s0 + $0x28] sm:$0xf]
  %v35 = vld [vmem:[%s0 + $0x2c] sm:$0xf]
  %v36 = vld [vmem:[%s0 + $0x30] sm:$0xf]
  %v37 = vld [vmem:[%s0 + $0x34] sm:$0xf]
  %v38 = vld [vmem:[%s0 + $0x38] sm:$0xf]
  %v39 = vld [vmem:[%s0 + $0x3c] sm:$0xf]
  %v40 = vld [vmem:[%s1] sm:$0xf]
  %v41 = vld [vmem:[%s1 + $0x4] sm:$0xf]
  %v42 = vld [vmem:[%s1 + $0x8] sm:$0xf]
  %v43 = vld [vmem:[%s1 + $0xc] sm:$0xf]
  %v44 = vld [vmem:[%s1 + $0x10] sm:$0xf]
  %v45 = vld [vmem:[%s1 + $0x14] sm:$0xf]
  %v46 = vld [vmem:[%s1 + $0x18] sm:$0xf]
  %v47 = vld [vmem:[%s1 + $0x1c] sm:$0xf]
  %v48 = vld [vmem:[%s1 + $0x20] sm:$0xf]
  %v49 = vld [vmem:[%s1 + $0x24] sm:$0xf]
  %v50 = vld [vmem:[%s1 + $0x28] sm:$0xf]
  %v51 = vld [vmem:[%s1 + $0x2c] sm:$0xf]
  %v52 = vld [vmem:[%s1 + $0x30] sm:$0xf]
  %v53 = vld [vmem:[%s1 + $0x34] sm:$0xf]
  %v54 = vld [vmem:[%s1 + $0x38] sm:$0xf]
  %v55 = vld [vmem:[%s1 + $0x3c] sm:$0xf]
  %v56 = vld [vmem:[%s2] sm:$0xf]
  %v57 = vld [vmem:[%s2 + $0x4] sm:$0xf]
  %v58 = vld [vmem:[%s2 + $0x8] sm:$0xf]
  %v59 = vld [vmem:[%s2 + $0xc] sm:$0xf]
  %v60 = vld [vmem:[%s2 + $0x10] sm:$0xf]
  %v61 = vld [vmem:[%s2 + $0x14] sm:$0xf]
  %v62 = vld [vmem:[%s2 + $0x18] sm:$0xf]
  %v63 = vld [vmem:[%s2 + $0x1c] sm:$0xf]
  %v64 = vld [vmem:[%s2 + $0x20] sm:$0xf]
  %v65 = vld [vmem:[%s2 + $0x24] sm:$0xf]
  %v66 = vld [vmem:[%s2 + $0x28] sm:$0xf]
  %v67 = vld [vmem:[%s2 + $0x2c] sm:$0xf]
  %v68 = vld [vmem:[%s2 + $0x30] sm:$0xf]
  %v69 = vld [vmem:[%s2 + $0x34] sm:$0xf]
  %v70 = vld [vmem:[%s2 + $0x38] sm:$0xf]
  %v71 = vld [vmem:[%s2 + $0x3c] sm:$0xf]
  %v72 = vld [vmem:[%s3] sm:$0x1]
  %v89 = vunpack.c.l.b16 %v40
  %v90 = vunpack.c.l.b16 %v41
  %v91 = vunpack.c.l.b16 %v42
  %v92 = vunpack.c.l.b16 %v43
  %v93 = vunpack.c.l.b16 %v44
  %v94 = vunpack.c.l.b16 %v45
  %v95 = vunpack.c.l.b16 %v46
  %v96 = vunpack.c.l.b16 %v47
  %v97 = vunpack.c.l.b16 %v48
  %v98 = vunpack.c.l.b16 %v49
  %v99 = vunpack.c.l.b16 %v50
  %v100 = vunpack.c.l.b16 %v51
  %v101 = vunpack.c.l.b16 %v52
  %v102 = vunpack.c.l.b16 %v53
  %v103 = vunpack.c.l.b16 %v54
  %v104 = vunpack.c.l.b16 %v55
  %v105 = vpack.c.b16 %v90, %v89
  %v106 = vpack.c.b16 %v92, %v91
  %v107 = vpack.c.b16 %v94, %v93
  %v108 = vpack.c.b16 %v96, %v95
  %v109 = vpack.c.b16 %v98, %v97
  %v110 = vpack.c.b16 %v100, %v99
  %v111 = vpack.c.b16 %v102, %v101
  %v112 = vpack.c.b16 %v104, %v103
  %v137 = vunpack.c.l.b16 %v56
  %v138 = vunpack.c.l.b16 %v57
  %v139 = vunpack.c.l.b16 %v58
  %v140 = vunpack.c.l.b16 %v59
  %v141 = vunpack.c.l.b16 %v60
  %v142 = vunpack.c.l.b16 %v61
  %v143 = vunpack.c.l.b16 %v62
  %v144 = vunpack.c.l.b16 %v63
  %v145 = vunpack.c.l.b16 %v64
  %v146 = vunpack.c.l.b16 %v65
  %v147 = vunpack.c.l.b16 %v66
  %v148 = vunpack.c.l.b16 %v67
  %v149 = vunpack.c.l.b16 %v68
  %v150 = vunpack.c.l.b16 %v69
  %v151 = vunpack.c.l.b16 %v70
  %v152 = vunpack.c.l.b16 %v71
  %v153 = vpack.c.b16 %v138, %v137
  %v154 = vpack.c.b16 %v140, %v139
  %v155 = vpack.c.b16 %v142, %v141
  %v156 = vpack.c.b16 %v144, %v143
  %v157 = vpack.c.b16 %v146, %v145
  %v158 = vpack.c.b16 %v148, %v147
  %v159 = vpack.c.b16 %v150, %v149
  %v160 = vpack.c.b16 %v152, %v151
  %169 = vmatprep.subr.bf16.mxu0 0
  %170 = vmatpush1.bf16.msra.mxu0 %v153
  %171 = vmatprep.subr.bf16.mxu0 0
  %172 = vmatpush1.bf16.msra.mxu0 %v154
  %173 = vmatprep.subr.bf16.mxu0 0
  %174 = vmatpush1.bf16.msra.mxu0 %v155
  %175 = vmatprep.subr.bf16.mxu0 0
  %176 = vmatpush1.bf16.msra.mxu0 %v156
  %177 = vmatprep.subr.bf16.mxu0 0
  %178 = vmatpush1.bf16.msra.mxu0 %v157
  %179 = vmatprep.subr.bf16.mxu0 0
  %180 = vmatpush1.bf16.msra.mxu0 %v158
  %181 = vmatprep.subr.bf16.mxu0 0
  %182 = vmatpush1.bf16.msra.mxu0 %v159
  %183 = vmatprep.subr.bf16.mxu0 0
  %184 = vmatpush1.bf16.msra.mxu0 %v160
  %185 = vmatprep.subr.bf16.mxu0 0
  %186 = vmatpush1.bf16.msra.mxu0 0
  %187 = vmatprep.subr.bf16.mxu0 0
  %188 = vmatpush1.bf16.msra.mxu0 0
  %189 = vmatprep.subr.bf16.mxu0 0
  %190 = vmatpush1.bf16.msra.mxu0 0
  %191 = vmatprep.subr.bf16.mxu0 0
  %192 = vmatpush1.bf16.msra.mxu0 0
  %193 = vmatprep.subr.bf16.mxu0 0
  %194 = vmatpush1.bf16.msra.mxu0 0
  %195 = vmatprep.subr.bf16.mxu0 0
  %196 = vmatpush1.bf16.msra.mxu0 0
  %197 = vmatprep.subr.bf16.mxu0 0
  %198 = vmatpush1.bf16.msra.mxu0 0
  %199 = vmatprep.subr.bf16.mxu0 0
  %200 = vmatpush1.bf16.msra.mxu0 0
  %201 = vmatprep.mubr.bf16.mxu0 0
  %202 = vmatmul.mubr.bf16.gmra.mrb[0].mxu0 %v105
  %v203 = vpop.f32.mrb[0].mxu0
  %v204 = vadd.f32 0.0, %v203
  %v205 = vpop.f32.mrb[0].mxu0
  %v206 = vpop.f32.mrb[0].mxu0
  %v207 = vadd.f32 0.0, %v206
  %v208 = vpop.f32.mrb[0].mxu0
  %209 = vmatprep.mubr.bf16.mxu0 0
  %210 = vmatmul.mubr.bf16.gmra.mrb[0].mxu0 %v106
  %v211 = vpop.f32.mrb[0].mxu0
  %v212 = vadd.f32 0.0, %v211
  %v213 = vpop.f32.mrb[0].mxu0
  %v214 = vpop.f32.mrb[0].mxu0
  %v215 = vadd.f32 0.0, %v214
  %v216 = vpop.f32.mrb[0].mxu0
  %217 = vmatprep.mubr.bf16.mxu0 0
  %218 = vmatmul.mubr.bf16.gmra.mrb[0].mxu0 %v107
  %v219 = vpop.f32.mrb[0].mxu0
  %v220 = vadd.f32 0.0, %v219
  %v221 = vpop.f32.mrb[0].mxu0
  %v222 = vpop.f32.mrb[0].mxu0
  %v223 = vadd.f32 0.0, %v222
  %v224 = vpop.f32.mrb[0].mxu0
  %225 = vmatprep.mubr.bf16.mxu0 0
  %226 = vmatmul.mubr.bf16.gmra.mrb[0].mxu0 %v108
  %v227 = vpop.f32.mrb[0].mxu0
  %v228 = vadd.f32 0.0, %v227
  %v229 = vpop.f32.mrb[0].mxu0
  %v230 = vpop.f32.mrb[0].mxu0
  %v231 = vadd.f32 0.0, %v230
  %v232 = vpop.f32.mrb[0].mxu0
  %233 = vmatprep.mubr.bf16.mxu0 0
  %234 = vmatmul.mubr.bf16.gmra.mrb[0].mxu0 %v109
  %v235 = vpop.f32.mrb[0].mxu0
  %v236 = vadd.f32 0.0, %v235
  %v237 = vpop.f32.mrb[0].mxu0
  %v238 = vpop.f32.mrb[0].mxu0
  %v239 = vadd.f32 0.0, %v238
  %v240 = vpop.f32.mrb[0].mxu0
  %241 = vmatprep.mubr.bf16.mxu0 0
  %242 = vmatmul.mubr.bf16.gmra.mrb[0].mxu0 %v110
  %v243 = vpop.f32.mrb[0].mxu0
  %v244 = vadd.f32 0.0, %v243
  %v245 = vpop.f32.mrb[0].mxu0
  %v246 = vpop.f32.mrb[0].mxu0
  %v247 = vadd.f32 0.0, %v246
  %v248 = vpop.f32.mrb[0].mxu0
  %249 = vmatprep.mubr.bf16.mxu0 0
  %250 = vmatmul.mubr.bf16.gmra.mrb[0].mxu0 %v111
  %v251 = vpop.f32.mrb[0].mxu0
  %v252 = vadd.f32 0.0, %v251
  %v253 = vpop.f32.mrb[0].mxu0
  %v254 = vpop.f32.mrb[0].mxu0
  %v255 = vadd.f32 0.0, %v254
  %v256 = vpop.f32.mrb[0].mxu0
  %257 = vmatprep.mubr.bf16.mxu0 0
  %258 = vmatmul.mubr.bf16.gmra.mrb[0].mxu0 %v112
  %v259 = vpop.f32.mrb[0].mxu0
  %v260 = vadd.f32 0.0, %v259
  %v261 = vpop.f32.mrb[0].mxu0
  %v262 = vpop.f32.mrb[0].mxu0
  %v263 = vadd.f32 0.0, %v262
  %v264 = vpop.f32.mrb[0].mxu0
  %265 = vdwg.mxu0
  %v266 = vpack.c.bf16 %v207, %v204
  %v267 = vpack.c.bf16 %v215, %v212
  %v268 = vpack.c.bf16 %v223, %v220
  %v269 = vpack.c.bf16 %v231, %v228
  %v270 = vpack.c.bf16 %v239, %v236
  %v271 = vpack.c.bf16 %v247, %v244
  %v272 = vpack.c.bf16 %v255, %v252
  %v273 = vpack.c.bf16 %v263, %v260
  %v275 = vlaneseq
  %v276 = vshrl.u32 %v275, 7
  %v277 = vsub.s32 0, %v276
  %v278 = vrot.slane %v72, %v277
  %v296 = vunpack.c.l.b16 %v24
  %v297 = vunpack.c.l.b16 %v25
  %v298 = vunpack.c.l.b16 %v26
  %v299 = vunpack.c.l.b16 %v27
  %v300 = vunpack.c.l.b16 %v28
  %v301 = vunpack.c.l.b16 %v29
  %v302 = vunpack.c.l.b16 %v30
  %v303 = vunpack.c.l.b16 %v31
  %v304 = vunpack.c.l.b16 %v32
  %v305 = vunpack.c.l.b16 %v33
  %v306 = vunpack.c.l.b16 %v34
  %v307 = vunpack.c.l.b16 %v35
  %v308 = vunpack.c.l.b16 %v36
  %v309 = vunpack.c.l.b16 %v37
  %v310 = vunpack.c.l.b16 %v38
  %v311 = vunpack.c.l.b16 %v39
  %v312 = vpack.c.b16 %v297, %v296
  %v313 = vpack.c.b16 %v299, %v298
  %v314 = vpack.c.b16 %v301, %v300
  %v315 = vpack.c.b16 %v303, %v302
  %v316 = vpack.c.b16 %v305, %v304
  %v317 = vpack.c.b16 %v307, %v306
  %v318 = vpack.c.b16 %v309, %v308
  %v319 = vpack.c.b16 %v311, %v310
  %328 = vmatprep.subr.bf16.mxu0 0
  %329 = vmatpush1.bf16.msra.mxu0 %v266
  %330 = vmatprep.subr.bf16.mxu0 0
  %331 = vmatpush1.bf16.msra.mxu0 %v267
  %332 = vmatprep.subr.bf16.mxu0 0
  %333 = vmatpush1.bf16.msra.mxu0 %v268
  %334 = vmatprep.subr.bf16.mxu0 0
  %335 = vmatpush1.bf16.msra.mxu0 %v269
  %336 = vmatprep.subr.bf16.mxu0 0
  %337 = vmatpush1.bf16.msra.mxu0 %v270
  %338 = vmatprep.subr.bf16.mxu0 0
  %339 = vmatpush1.bf16.msra.mxu0 %v271
  %340 = vmatprep.subr.bf16.mxu0 0
  %341 = vmatpush1.bf16.msra.mxu0 %v272
  %342 = vmatprep.subr.bf16.mxu0 0
  %343 = vmatpush1.bf16.msra.mxu0 %v273
  %344 = vmatprep.subr.bf16.mxu0 0
  %345 = vmatpush1.bf16.msra.mxu0 0
  %346 = vmatprep.subr.bf16.mxu0 0
  %347 = vmatpush1.bf16.msra.mxu0 0
  %348 = vmatprep.subr.bf16.mxu0 0
  %349 = vmatpush1.bf16.msra.mxu0 0
  %350 = vmatprep.subr.bf16.mxu0 0
  %351 = vmatpush1.bf16.msra.mxu0 0
  %352 = vmatprep.subr.bf16.mxu0 0
  %353 = vmatpush1.bf16.msra.mxu0 0
  %354 = vmatprep.subr.bf16.mxu0 0
  %355 = vmatpush1.bf16.msra.mxu0 0
  %356 = vmatprep.subr.bf16.mxu0 0
  %357 = vmatpush1.bf16.msra.mxu0 0
  %358 = vmatprep.subr.bf16.mxu0 0
  %359 = vmatpush1.bf16.msra.mxu0 0
  %360 = vmatprep.mubr.bf16.mxu0 0
  %361 = vmatmul.mubr.bf16.gmra.mrb[0].mxu0 %v312
  %v362 = vpop.f32.mrb[0].mxu0
  %v363 = vadd.f32 %v278, %v362
  %v364 = vpop.f32.mrb[0].mxu0
  %v365 = vpop.f32.mrb[0].mxu0
  %v366 = vadd.f32 %v278, %v365
  %v367 = vpop.f32.mrb[0].mxu0
  %368 = vmatprep.mubr.bf16.mxu0 0
  %369 = vmatmul.mubr.bf16.gmra.mrb[0].mxu0 %v313
  %v370 = vpop.f32.mrb[0].mxu0
  %v371 = vadd.f32 %v278, %v370
  %v372 = vpop.f32.mrb[0].mxu0
  %v373 = vpop.f32.mrb[0].mxu0
  %v374 = vadd.f32 %v278, %v373
  %v375 = vpop.f32.mrb[0].mxu0
  %376 = vmatprep.mubr.bf16.mxu0 0
  %377 = vmatmul.mubr.bf16.gmra.mrb[0].mxu0 %v314
  %v378 = vpop.f32.mrb[0].mxu0
  %v379 = vadd.f32 %v278, %v378
  %v380 = vpop.f32.mrb[0].mxu0
  %v381 = vpop.f32.mrb[0].mxu0
  %v382 = vadd.f32 %v278, %v381
  %v383 = vpop.f32.mrb[0].mxu0
  %384 = vmatprep.mubr.bf16.mxu0 0
  %385 = vmatmul.mubr.bf16.gmra.mrb[0].mxu0 %v315
  %v386 = vpop.f32.mrb[0].mxu0
  %v387 = vadd.f32 %v278, %v386
  %v388 = vpop.f32.mrb[0].mxu0
  %v389 = vpop.f32.mrb[0].mxu0
  %v390 = vadd.f32 %v278, %v389
  %v391 = vpop.f32.mrb[0].mxu0
  %392 = vmatprep.mubr.bf16.mxu0 0
  %393 = vmatmul.mubr.bf16.gmra.mrb[0].mxu0 %v316
  %v394 = vpop.f32.mrb[0].mxu0
  %v395 = vadd.f32 %v278, %v394
  %v396 = vpop.f32.mrb[0].mxu0
  %v397 = vpop.f32.mrb[0].mxu0
  %v398 = vadd.f32 %v278, %v397
  %v399 = vpop.f32.mrb[0].mxu0
  %400 = vmatprep.mubr.bf16.mxu0 0
  %401 = vmatmul.mubr.bf16.gmra.mrb[0].mxu0 %v317
  %v402 = vpop.f32.mrb[0].mxu0
  %v403 = vadd.f32 %v278, %v402
  %v404 = vpop.f32.mrb[0].mxu0
  %v405 = vpop.f32.mrb[0].mxu0
  %v406 = vadd.f32 %v278, %v405
  %v407 = vpop.f32.mrb[0].mxu0
  %408 = vmatprep.mubr.bf16.mxu0 0
  %409 = vmatmul.mubr.bf16.gmra.mrb[0].mxu0 %v318
  %v410 = vpop.f32.mrb[0].mxu0
  %v411 = vadd.f32 %v278, %v410
  %v412 = vpop.f32.mrb[0].mxu0
  %v413 = vpop.f32.mrb[0].mxu0
  %v414 = vadd.f32 %v278, %v413
  %v415 = vpop.f32.mrb[0].mxu0
  %416 = vmatprep.mubr.bf16.mxu0 0
  %417 = vmatmul.mubr.bf16.gmra.mrb[0].mxu0 %v319
  %v418 = vpop.f32.mrb[0].mxu0
  %v419 = vadd.f32 %v278, %v418
  %v420 = vpop.f32.mrb[0].mxu0
  %v421 = vpop.f32.mrb[0].mxu0
  %v422 = vadd.f32 %v278, %v421
  %v423 = vpop.f32.mrb[0].mxu0
  %424 = vdwg.mxu0
  %v425 = vmax.f32 %v363, 0.0
  %v426 = vmax.f32 %v366, 0.0
  %v427 = vmax.f32 %v371, 0.0
  %v428 = vmax.f32 %v374, 0.0
  %v429 = vmax.f32 %v379, 0.0
  %v430 = vmax.f32 %v382, 0.0
  %v431 = vmax.f32 %v387, 0.0
  %v432 = vmax.f32 %v390, 0.0
  %v433 = vmax.f32 %v395, 0.0
  %v434 = vmax.f32 %v398, 0.0
  %v435 = vmax.f32 %v403, 0.0
  %v436 = vmax.f32 %v406, 0.0
  %v437 = vmax.f32 %v411, 0.0
  %v438 = vmax.f32 %v414, 0.0
  %v439 = vmax.f32 %v419, 0.0
  %v440 = vmax.f32 %v422, 0.0
  %v441 = vpack.c.bf16 %v426, %v425
  %v442 = vpack.c.bf16 %v428, %v427
  %v443 = vpack.c.bf16 %v430, %v429
  %v444 = vpack.c.bf16 %v432, %v431
  %v445 = vpack.c.bf16 %v434, %v433
  %v446 = vpack.c.bf16 %v436, %v435
  %v447 = vpack.c.bf16 %v438, %v437
  %v448 = vpack.c.bf16 %v440, %v439
  %v449 = vld [vmem:[%s4] sm:$0xf]
  %v450 = vld [vmem:[%s4 + $0x4] sm:$0xf]
  %v451 = vld [vmem:[%s4 + $0x8] sm:$0xf]
  %v452 = vld [vmem:[%s4 + $0xc] sm:$0xf]
  %v453 = vld [vmem:[%s4 + $0x10] sm:$0xf]
  %v454 = vld [vmem:[%s4 + $0x14] sm:$0xf]
  %v455 = vld [vmem:[%s4 + $0x18] sm:$0xf]
  %v456 = vld [vmem:[%s4 + $0x1c] sm:$0xf]
  %v457 = vld [vmem:[%s4 + $0x20] sm:$0xf]
  %v458 = vld [vmem:[%s4 + $0x24] sm:$0xf]
  %v459 = vld [vmem:[%s4 + $0x28] sm:$0xf]
  %v460 = vld [vmem:[%s4 + $0x2c] sm:$0xf]
  %v461 = vld [vmem:[%s4 + $0x30] sm:$0xf]
  %v462 = vld [vmem:[%s4 + $0x34] sm:$0xf]
  %v463 = vld [vmem:[%s4 + $0x38] sm:$0xf]
  %v464 = vld [vmem:[%s4 + $0x3c] sm:$0xf]
  %v465 = vld [vmem:[%s5] sm:$0x1]
  %v482 = vunpack.c.l.b16 %v449
  %v483 = vunpack.c.l.b16 %v450
  %v484 = vunpack.c.l.b16 %v451
  %v485 = vunpack.c.l.b16 %v452
  %v486 = vunpack.c.l.b16 %v453
  %v487 = vunpack.c.l.b16 %v454
  %v488 = vunpack.c.l.b16 %v455
  %v489 = vunpack.c.l.b16 %v456
  %v490 = vunpack.c.l.b16 %v457
  %v491 = vunpack.c.l.b16 %v458
  %v492 = vunpack.c.l.b16 %v459
  %v493 = vunpack.c.l.b16 %v460
  %v494 = vunpack.c.l.b16 %v461
  %v495 = vunpack.c.l.b16 %v462
  %v496 = vunpack.c.l.b16 %v463
  %v497 = vunpack.c.l.b16 %v464
  %v498 = vpack.c.b16 %v483, %v482
  %v499 = vpack.c.b16 %v485, %v484
  %v500 = vpack.c.b16 %v487, %v486
  %v501 = vpack.c.b16 %v489, %v488
  %v502 = vpack.c.b16 %v491, %v490
  %v503 = vpack.c.b16 %v493, %v492
  %v504 = vpack.c.b16 %v495, %v494
  %v505 = vpack.c.b16 %v497, %v496
  %514 = vmatprep.subr.bf16.mxu0 0
  %515 = vmatpush1.bf16.msra.mxu0 %v498
  %516 = vmatprep.subr.bf16.mxu0 0
  %517 = vmatpush1.bf16.msra.mxu0 %v499
  %518 = vmatprep.subr.bf16.mxu0 0
  %519 = vmatpush1.bf16.msra.mxu0 %v500
  %520 = vmatprep.subr.bf16.mxu0 0
  %521 = vmatpush1.bf16.msra.mxu0 %v501
  %522 = vmatprep.subr.bf16.mxu0 0
  %523 = vmatpush1.bf16.msra.mxu0 %v502
  %524 = vmatprep.subr.bf16.mxu0 0
  %525 = vmatpush1.bf16.msra.mxu0 %v503
  %526 = vmatprep.subr.bf16.mxu0 0
  %527 = vmatpush1.bf16.msra.mxu0 %v504
  %528 = vmatprep.subr.bf16.mxu0 0
  %529 = vmatpush1.bf16.msra.mxu0 %v505
  %530 = vmatprep.subr.bf16.mxu0 0
  %531 = vmatpush1.bf16.msra.mxu0 0
  %532 = vmatprep.subr.bf16.mxu0 0
  %533 = vmatpush1.bf16.msra.mxu0 0
  %534 = vmatprep.subr.bf16.mxu0 0
  %535 = vmatpush1.bf16.msra.mxu0 0
  %536 = vmatprep.subr.bf16.mxu0 0
  %537 = vmatpush1.bf16.msra.mxu0 0
  %538 = vmatprep.subr.bf16.mxu0 0
  %539 = vmatpush1.bf16.msra.mxu0 0
  %540 = vmatprep.subr.bf16.mxu0 0
  %541 = vmatpush1.bf16.msra.mxu0 0
  %542 = vmatprep.subr.bf16.mxu0 0
  %543 = vmatpush1.bf16.msra.mxu0 0
  %544 = vmatprep.subr.bf16.mxu0 0
  %545 = vmatpush1.bf16.msra.mxu0 0
  %546 = vmatprep.mubr.bf16.mxu0 0
  %547 = vmatmul.mubr.bf16.gmra.mrb[0].mxu0 %v441
  %v548 = vpop.f32.mrb[0].mxu0
  %v549 = vadd.f32 0.0, %v548
  %v550 = vpop.f32.mrb[0].mxu0
  %v551 = vpop.f32.mrb[0].mxu0
  %v552 = vadd.f32 0.0, %v551
  %v553 = vpop.f32.mrb[0].mxu0
  %554 = vmatprep.mubr.bf16.mxu0 0
  %555 = vmatmul.mubr.bf16.gmra.mrb[0].mxu0 %v442
  %v556 = vpop.f32.mrb[0].mxu0
  %v557 = vadd.f32 0.0, %v556
  %v558 = vpop.f32.mrb[0].mxu0
  %v559 = vpop.f32.mrb[0].mxu0
  %v560 = vadd.f32 0.0, %v559
  %v561 = vpop.f32.mrb[0].mxu0
  %562 = vmatprep.mubr.bf16.mxu0 0
  %563 = vmatmul.mubr.bf16.gmra.mrb[0].mxu0 %v443
  %v564 = vpop.f32.mrb[0].mxu0
  %v565 = vadd.f32 0.0, %v564
  %v566 = vpop.f32.mrb[0].mxu0
  %v567 = vpop.f32.mrb[0].mxu0
  %v568 = vadd.f32 0.0, %v567
  %v569 = vpop.f32.mrb[0].mxu0
  %570 = vmatprep.mubr.bf16.mxu0 0
  %571 = vmatmul.mubr.bf16.gmra.mrb[0].mxu0 %v444
  %v572 = vpop.f32.mrb[0].mxu0
  %v573 = vadd.f32 0.0, %v572
  %v574 = vpop.f32.mrb[0].mxu0
  %v575 = vpop.f32.mrb[0].mxu0
  %v576 = vadd.f32 0.0, %v575
  %v577 = vpop.f32.mrb[0].mxu0
  %578 = vmatprep.mubr.bf16.mxu0 0
  %579 = vmatmul.mubr.bf16.gmra.mrb[0].mxu0 %v445
  %v580 = vpop.f32.mrb[0].mxu0
  %v581 = vadd.f32 0.0, %v580
  %v582 = vpop.f32.mrb[0].mxu0
  %v583 = vpop.f32.mrb[0].mxu0
  %v584 = vadd.f32 0.0, %v583
  %v585 = vpop.f32.mrb[0].mxu0
  %586 = vmatprep.mubr.bf16.mxu0 0
  %587 = vmatmul.mubr.bf16.gmra.mrb[0].mxu0 %v446
  %v588 = vpop.f32.mrb[0].mxu0
  %v589 = vadd.f32 0.0, %v588
  %v590 = vpop.f32.mrb[0].mxu0
  %v591 = vpop.f32.mrb[0].mxu0
  %v592 = vadd.f32 0.0, %v591
  %v593 = vpop.f32.mrb[0].mxu0
  %594 = vmatprep.mubr.bf16.mxu0 0
  %595 = vmatmul.mubr.bf16.gmra.mrb[0].mxu0 %v447
  %v596 = vpop.f32.mrb[0].mxu0
  %v597 = vadd.f32 0.0, %v596
  %v598 = vpop.f32.mrb[0].mxu0
  %v599 = vpop.f32.mrb[0].mxu0
  %v600 = vadd.f32 0.0, %v599
  %v601 = vpop.f32.mrb[0].mxu0
  %602 = vmatprep.mubr.bf16.mxu0 0
  %603 = vmatmul.mubr.bf16.gmra.mrb[0].mxu0 %v448
  %v604 = vpop.f32.mrb[0].mxu0
  %v605 = vadd.f32 0.0, %v604
  %v606 = vpop.f32.mrb[0].mxu0
  %v607 = vpop.f32.mrb[0].mxu0
  %v608 = vadd.f32 0.0, %v607
  %v609 = vpop.f32.mrb[0].mxu0
  %610 = vdwg.mxu0
  %v611 = vpack.c.bf16 %v552, %v549
  %v612 = vpack.c.bf16 %v560, %v557
  %v613 = vpack.c.bf16 %v568, %v565
  %v614 = vpack.c.bf16 %v576, %v573
  %v615 = vpack.c.bf16 %v584, %v581
  %v616 = vpack.c.bf16 %v592, %v589
  %v617 = vpack.c.bf16 %v600, %v597
  %v618 = vpack.c.bf16 %v608, %v605
  %v620 = vlaneseq
  %v621 = vshrl.u32 %v620, 7
  %v622 = vsub.s32 0, %v621
  %v623 = vrot.slane %v465, %v622
  %625 = vmatprep.subr.bf16.mxu0 0
  %626 = vmatpush1.bf16.msra.mxu0 %v611
  %627 = vmatprep.subr.bf16.mxu0 0
  %628 = vmatpush1.bf16.msra.mxu0 %v612
  %629 = vmatprep.subr.bf16.mxu0 0
  %630 = vmatpush1.bf16.msra.mxu0 %v613
  %631 = vmatprep.subr.bf16.mxu0 0
  %632 = vmatpush1.bf16.msra.mxu0 %v614
  %633 = vmatprep.subr.bf16.mxu0 0
  %634 = vmatpush1.bf16.msra.mxu0 %v615
  %635 = vmatprep.subr.bf16.mxu0 0
  %636 = vmatpush1.bf16.msra.mxu0 %v616
  %637 = vmatprep.subr.bf16.mxu0 0
  %638 = vmatpush1.bf16.msra.mxu0 %v617
  %639 = vmatprep.subr.bf16.mxu0 0
  %640 = vmatpush1.bf16.msra.mxu0 %v618
  %641 = vmatprep.subr.bf16.mxu0 0
  %642 = vmatpush1.bf16.msra.mxu0 0
  %643 = vmatprep.subr.bf16.mxu0 0
  %644 = vmatpush1.bf16.msra.mxu0 0
  %645 = vmatprep.subr.bf16.mxu0 0
  %646 = vmatpush1.bf16.msra.mxu0 0
  %647 = vmatprep.subr.bf16.mxu0 0
  %648 = vmatpush1.bf16.msra.mxu0 0
  %649 = vmatprep.subr.bf16.mxu0 0
  %650 = vmatpush1.bf16.msra.mxu0 0
  %651 = vmatprep.subr.bf16.mxu0 0
  %652 = vmatpush1.bf16.msra.mxu0 0
  %653 = vmatprep.subr.bf16.mxu0 0
  %654 = vmatpush1.bf16.msra.mxu0 0
  %655 = vmatprep.subr.bf16.mxu0 0
  %656 = vmatpush1.bf16.msra.mxu0 0
  %657 = vmatprep.mubr.bf16.mxu0 0
  %658 = vmatmul.mubr.bf16.gmra.mrb[0].mxu0 %v312
  %v659 = vpop.f32.mrb[0].mxu0
  %v660 = vadd.f32 %v623, %v659
  %v661 = vpop.f32.mrb[0].mxu0
  %v662 = vpop.f32.mrb[0].mxu0
  %v663 = vadd.f32 %v623, %v662
  %v664 = vpop.f32.mrb[0].mxu0
  %665 = vmatprep.mubr.bf16.mxu0 0
  %666 = vmatmul.mubr.bf16.gmra.mrb[0].mxu0 %v313
  %v667 = vpop.f32.mrb[0].mxu0
  %v668 = vadd.f32 %v623, %v667
  %v669 = vpop.f32.mrb[0].mxu0
  %v670 = vpop.f32.mrb[0].mxu0
  %v671 = vadd.f32 %v623, %v670
  %v672 = vpop.f32.mrb[0].mxu0
  %673 = vmatprep.mubr.bf16.mxu0 0
  %674 = vmatmul.mubr.bf16.gmra.mrb[0].mxu0 %v314
  %v675 = vpop.f32.mrb[0].mxu0
  %v676 = vadd.f32 %v623, %v675
  %v677 = vpop.f32.mrb[0].mxu0
  %v678 = vpop.f32.mrb[0].mxu0
  %v679 = vadd.f32 %v623, %v678
  %v680 = vpop.f32.mrb[0].mxu0
  %681 = vmatprep.mubr.bf16.mxu0 0
  %682 = vmatmul.mubr.bf16.gmra.mrb[0].mxu0 %v315
  %v683 = vpop.f32.mrb[0].mxu0
  %v684 = vadd.f32 %v623, %v683
  %v685 = vpop.f32.mrb[0].mxu0
  %v686 = vpop.f32.mrb[0].mxu0
  %v687 = vadd.f32 %v623, %v686
  %v688 = vpop.f32.mrb[0].mxu0
  %689 = vmatprep.mubr.bf16.mxu0 0
  %690 = vmatmul.mubr.bf16.gmra.mrb[0].mxu0 %v316
  %v691 = vpop.f32.mrb[0].mxu0
  %v692 = vadd.f32 %v623, %v691
  %v693 = vpop.f32.mrb[0].mxu0
  %v694 = vpop.f32.mrb[0].mxu0
  %v695 = vadd.f32 %v623, %v694
  %v696 = vpop.f32.mrb[0].mxu0
  %697 = vmatprep.mubr.bf16.mxu0 0
  %698 = vmatmul.mubr.bf16.gmra.mrb[0].mxu0 %v317
  %v699 = vpop.f32.mrb[0].mxu0
  %v700 = vadd.f32 %v623, %v699
  %v701 = vpop.f32.mrb[0].mxu0
  %v702 = vpop.f32.mrb[0].mxu0
  %v703 = vadd.f32 %v623, %v702
  %v704 = vpop.f32.mrb[0].mxu0
  %705 = vmatprep.mubr.bf16.mxu0 0
  %706 = vmatmul.mubr.bf16.gmra.mrb[0].mxu0 %v318
  %v707 = vpop.f32.mrb[0].mxu0
  %v708 = vadd.f32 %v623, %v707
  %v709 = vpop.f32.mrb[0].mxu0
  %v710 = vpop.f32.mrb[0].mxu0
  %v711 = vadd.f32 %v623, %v710
  %v712 = vpop.f32.mrb[0].mxu0
  %713 = vmatprep.mubr.bf16.mxu0 0
  %714 = vmatmul.mubr.bf16.gmra.mrb[0].mxu0 %v319
  %v715 = vpop.f32.mrb[0].mxu0
  %v716 = vadd.f32 %v623, %v715
  %v717 = vpop.f32.mrb[0].mxu0
  %v718 = vpop.f32.mrb[0].mxu0
  %v719 = vadd.f32 %v623, %v718
  %v720 = vpop.f32.mrb[0].mxu0
  %721 = vdwg.mxu0
  %v722 = vmax.f32 %v660, 0.0
  %v723 = vmax.f32 %v663, 0.0
  %v724 = vmax.f32 %v668, 0.0
  %v725 = vmax.f32 %v671, 0.0
  %v726 = vmax.f32 %v676, 0.0
  %v727 = vmax.f32 %v679, 0.0
  %v728 = vmax.f32 %v684, 0.0
  %v729 = vmax.f32 %v687, 0.0
  %v730 = vmax.f32 %v692, 0.0
  %v731 = vmax.f32 %v695, 0.0
  %v732 = vmax.f32 %v700, 0.0
  %v733 = vmax.f32 %v703, 0.0
  %v734 = vmax.f32 %v708, 0.0
  %v735 = vmax.f32 %v711, 0.0
  %v736 = vmax.f32 %v716, 0.0
  %v737 = vmax.f32 %v719, 0.0
  %738 = vst [vmem:[%s6] sm:$0xff] %v722
  %739 = vst [vmem:[%s6 + $0x8] sm:$0xff] %v723
  %740 = vst [vmem:[%s6 + $0x10] sm:$0xff] %v724
  %741 = vst [vmem:[%s6 + $0x18] sm:$0xff] %v725
  %742 = vst [vmem:[%s6 + $0x20] sm:$0xff] %v726
  %743 = vst [vmem:[%s6 + $0x28] sm:$0xff] %v727
  %744 = vst [vmem:[%s6 + $0x30] sm:$0xff] %v728
  %745 = vst [vmem:[%s6 + $0x38] sm:$0xff] %v729
  %746 = vst [vmem:[%s6 + $0x40] sm:$0xff] %v730
  %747 = vst [vmem:[%s6 + $0x48] sm:$0xff] %v731
  %748 = vst [vmem:[%s6 + $0x50] sm:$0xff] %v732
  %749 = vst [vmem:[%s6 + $0x58] sm:$0xff] %v733
  %750 = vst [vmem:[%s6 + $0x60] sm:$0xff] %v734
  %751 = vst [vmem:[%s6 + $0x68] sm:$0xff] %v735
  %752 = vst [vmem:[%s6 + $0x70] sm:$0xff] %v736
  %753 = vst [vmem:[%s6 + $0x78] sm:$0xff] %v737
  // Predicated region
  $region26: #{forward.1} parent=0 // pred_check
    _
  $region27: #{forward.1} parent=0 // pred_check_branch
    %755 = sbr.rel (0) target = $region29
  $region28: #{forward.1} parent=0 // pred_region
    _
  $region29: #{forward.1} parent=0 // pred_fallthru
    _
  // Predicated region
  $region30: #{forward.1} parent=0 // pred_check
    _
  $region31: #{forward.1} parent=0 // pred_check_branch
    %757 = sbr.rel (0) target = $region33
  $region32: #{forward.1} parent=0 // pred_region
    _
  $region33: #{forward.1} parent=0 // pred_fallthru
    _

</llo_original>
